<compile_context>
chip_gen: v5e
topology: v5e:2x2
jax: 0.10.0
libtpu: 0.0.40
codegen_flags: <defaults>
</compile_context>

<pallas_src>
import jax
import jax.numpy as jnp
from jax.experimental import pallas as pl
from jax.experimental.pallas import tpu as pltpu

CIN, COUT, K = 4, 8, 3
KKC = K * K * CIN            # 36  features per branch
KKC2 = 2 * KKC               # 72  [c2s patches | h2h/g2g patches]
COUT3 = 3 * COUT             # 24  [c2s | h2h | g2g] output rows


def fused_convtranspose_kernel(lhs_ref, w_ref, b_ref, o_ref):
    # Single block-diagonal MXU push computes all three branches at once:
    #   (24, 72) @ (72, Mp) -> (24, Mp)
    acc = jnp.dot(w_ref[...], lhs_ref[...], preferred_element_type=jnp.float32)
    acc = acc + b_ref[...]                       # one (24,1) bias broadcast
    c2s = acc[0:COUT, :]
    h2h = acc[COUT:2 * COUT, :]
    g2g = acc[2 * COUT:3 * COUT, :]
    x1 = jnp.maximum(c2s, 0.0) + jnp.maximum(g2g, 0.0) + h2h
    o_ref[...] = jax.nn.sigmoid(x1)              # lane-dense (8, Mp) store


def _im2col(xpad, ho, wo):
    # xpad: (N, Hp, Wp, Cin) -> (N, ho*wo, K*K*Cin); tap order (dy, dx, ci).
    n = xpad.shape[0]
    cols = []
    for dy in range(K):
        for dx in range(K):
            cols.append(xpad[:, dy:dy + ho, dx:dx + wo, :])
    pat = jnp.concatenate(cols, axis=-1)
    return pat.reshape(n, ho * wo, KKC)


def _to_matmul_weight(w_t):
    # torch ConvTranspose2d weight (Cin, Cout, K, K) -> flipped correlation
    # weight flattened to (K*K*Cin, Cout), same (dy, dx, ci) order as _im2col.
    w_conv = jnp.transpose(jnp.flip(w_t, (2, 3)), (2, 3, 0, 1))
    return w_conv.reshape(KKC, COUT)


@jax.jit
def model_forward(x_nchw, params):
    (wc_t, bc), (wh_t, bh), (wg_t, bg) = params
    n, cin, h, w = x_nchw.shape
    x = jnp.transpose(x_nchw, (0, 2, 3, 1)).astype(jnp.float32)  # NHWC

    # c2s: stride=2, padding=0  -> dilate input by 2, pad 2 on every side.
    xs = jnp.zeros((n, 2 * h - 1, 2 * w - 1, cin), jnp.float32)
    xs = xs.at[:, ::2, ::2, :].set(x)
    xs = jnp.pad(xs, ((0, 0), (2, 2), (2, 2), (0, 0)))
    # h2h / g2g: stride=1, padding=1, output_padding=1 -> pad (1, 2) per side.
    xh = jnp.pad(x, ((0, 0), (1, 2), (1, 2), (0, 0)))

    ho, wo = h + 1, w + 1
    p = ho * wo
    m = n * p
    mp = ((m + 127) // 128) * 128            # lane-dense padding of the M axis

    # TODO(synk): the original PyTorch forward adds tensors of incompatible
    # spatial size ((2H+1,2W+1) vs (H+1,W+1)) and is not runnable as written;
    # here the c2s branch is cropped to the top-left (H+1, W+1) window so the
    # fused elementwise stage is well-defined.
    ps = _im2col(xs, ho, wo)                 # (N, P, 36) top-left crop of c2s
    ph = _im2col(xh, ho, wo)                 # (N, P, 36)
    lhs = jnp.concatenate([ps, ph], axis=-1).reshape(m, KKC2)       # (M, 72)
    lhs_t = jnp.zeros((KKC2, mp), jnp.float32).at[:, :m].set(lhs.T)  # (72, Mp)

    # Block-diagonal fused weight (already transposed) and stacked bias.
    wT = jnp.zeros((COUT3, KKC2), jnp.float32)
    wT = wT.at[0:COUT, 0:KKC].set(_to_matmul_weight(wc_t).T)           # c2s
    wT = wT.at[COUT:2 * COUT, KKC:KKC2].set(_to_matmul_weight(wh_t).T)  # h2h
    wT = wT.at[2 * COUT:COUT3, KKC:KKC2].set(_to_matmul_weight(wg_t).T)  # g2g
    b24 = jnp.concatenate([bc, bh, bg]).reshape(COUT3, 1)

    full = lambda s: pl.BlockSpec(s, lambda i: (0, 0))
    out8 = pl.pallas_call(
        fused_convtranspose_kernel,
        out_shape=jax.ShapeDtypeStruct((COUT, mp), jnp.float32),
        grid=(1,),
        in_specs=[full((KKC2, mp)), full((COUT3, KKC2)), full((COUT3, 1))],
        out_specs=full((COUT, mp)),
        compiler_params=pltpu.CompilerParams(
            dimension_semantics=("arbitrary",)),
    )(lhs_t, wT, b24)

    out = out8[:, :m].reshape(COUT, n, ho, wo)
    return jnp.transpose(out, (1, 0, 2, 3))  # back to NCHW


def reference_forward(x_nchw, params):
    # Pure-JAX reference (no Pallas) with identical crop convention.
    (wc, bc), (wh, bh), (wg, bg) = params

    def convT(x, w, b, stride, pad):
        rhs = jnp.transpose(jnp.flip(w, (2, 3)), (1, 0, 2, 3))  # (Cout,Cin,K,K)
        y = jax.lax.conv_general_dilated(
            x, rhs, window_strides=(1, 1), padding=pad, lhs_dilation=stride,
            dimension_numbers=('NCHW', 'OIHW', 'NCHW'))
        return y + b[None, :, None, None]

    c2s = convT(x_nchw, wc, bc, (2, 2), ((2, 2), (2, 2)))
    h2h = convT(x_nchw, wh, bh, (1, 1), ((1, 2), (1, 2)))
    g2g = convT(x_nchw, wg, bg, (1, 1), ((1, 2), (1, 2)))
    ho, wo = h2h.shape[2], h2h.shape[3]
    x1 = jax.nn.relu(c2s[:, :, :ho, :wo]) + jax.nn.relu(g2g) + h2h
    return jax.nn.sigmoid(x1)


def init_params(key):
    keys = jax.random.split(key, 6)

    def one(kw, kb):
        bound = 1.0 / (CIN * K * K) ** 0.5
        w = jax.random.uniform(kw, (CIN, COUT, K, K), jnp.float32, -bound, bound)
        b = jax.random.uniform(kb, (COUT,), jnp.float32, -bound, bound)
        return w, b

    return (one(keys[0], keys[1]), one(keys[2], keys[3]), one(keys[4], keys[5]))


if __name__ == "__main__":
    key = jax.random.PRNGKey(0)
    pkey, xkey = jax.random.split(key)
    params = init_params(pkey)
    x0 = jax.random.normal(xkey, (2, CIN, 16, 16), jnp.float32)

    y = jax.block_until_ready(model_forward(x0, params))
    y_ref = reference_forward(x0, params)

    assert y.shape == (2, COUT, 17, 17), y.shape
    assert jnp.allclose(y, y_ref, atol=1e-5, rtol=1e-5), \
        float(jnp.max(jnp.abs(y - y_ref)))
    print("KERNEL_OK")
</pallas_src>

<mosaic_0001>
module attributes {stable_mosaic.version = 11 : i64} {
  func.func @fused_convtranspose_kernel(%arg0: i32, %arg1: memref<72x640xf32, #tpu.memory_space<vmem>>, %arg2: memref<24x72xf32, #tpu.memory_space<vmem>>, %arg3: memref<24x1xf32, #tpu.memory_space<vmem>>, %arg4: memref<8x640xf32, #tpu.memory_space<vmem>>) attributes {dimension_semantics = [#tpu.dimension_semantics<arbitrary>], iteration_bounds = array<i64: 1>, scalar_prefetch = 0 : i64, scratch_operands = 0 : i64, tpu.core_type = #tpu.core_type<tc>, window_params = [{pipeline_mode = #tpu.pipeline_mode<synchronous>, transform_indices = @transform_0, window_bounds = array<i64: 72, 640>}, {pipeline_mode = #tpu.pipeline_mode<synchronous>, transform_indices = @transform_1, window_bounds = array<i64: 24, 72>}, {pipeline_mode = #tpu.pipeline_mode<synchronous>, transform_indices = @transform_2, window_bounds = array<i64: 24, 1>}, {pipeline_mode = #tpu.pipeline_mode<synchronous>, transform_indices = @transform_3, window_bounds = array<i64: 8, 640>}]} {
    %c0 = arith.constant 0 : index
    %c0_0 = arith.constant 0 : index
    %0 = vector.load %arg2[%c0, %c0_0] : memref<24x72xf32, #tpu.memory_space<vmem>>, vector<24x72xf32>
    %c0_1 = arith.constant 0 : index
    %c0_2 = arith.constant 0 : index
    %1 = vector.load %arg1[%c0_1, %c0_2] : memref<72x640xf32, #tpu.memory_space<vmem>>, vector<72x640xf32>
    %cst = arith.constant dense<0.000000e+00> : vector<24x640xf32>
    %2 = tpu.matmul %0, %1, %cst {dimension_numbers = #tpu.dot_dimension_numbers<[1], [0], [0], [1], [0, 0, 1, 1], [], []>} : vector<24x72xf32>, vector<72x640xf32>, vector<24x640xf32> -> vector<24x640xf32>
    %c0_3 = arith.constant 0 : index
    %c0_4 = arith.constant 0 : index
    %3 = vector.load %arg3[%c0_3, %c0_4] : memref<24x1xf32, #tpu.memory_space<vmem>>, vector<24x1xf32>
    %4 = vector.broadcast %3 : vector<24x1xf32> to vector<24x640xf32>
    %5 = arith.addf %2, %4 : vector<24x640xf32>
    %6 = vector.extract_strided_slice %5 {offsets = [0, 0], sizes = [8, 640], strides = [1, 1]} : vector<24x640xf32> to vector<8x640xf32>
    %7 = vector.extract_strided_slice %5 {offsets = [8, 0], sizes = [8, 640], strides = [1, 1]} : vector<24x640xf32> to vector<8x640xf32>
    %8 = vector.extract_strided_slice %5 {offsets = [16, 0], sizes = [8, 640], strides = [1, 1]} : vector<24x640xf32> to vector<8x640xf32>
    %cst_5 = arith.constant 0.000000e+00 : f32
    %9 = vector.broadcast %cst_5 : f32 to vector<8x640xf32>
    %10 = arith.maximumf %6, %9 : vector<8x640xf32>
    %cst_6 = arith.constant 0.000000e+00 : f32
    %11 = vector.broadcast %cst_6 : f32 to vector<8x640xf32>
    %12 = arith.maximumf %8, %11 : vector<8x640xf32>
    %13 = arith.addf %10, %12 : vector<8x640xf32>
    %14 = arith.addf %13, %7 : vector<8x640xf32>
    %15 = arith.negf %14 : vector<8x640xf32>
    %16 = math.exp %15 : vector<8x640xf32>
    %cst_7 = arith.constant 1.000000e+00 : f32
    %17 = vector.broadcast %cst_7 : f32 to vector<8x640xf32>
    %18 = arith.addf %17, %16 : vector<8x640xf32>
    %19 = arith.divf %17, %18 : vector<8x640xf32>
    %c0_8 = arith.constant 0 : index
    %c0_9 = arith.constant 0 : index
    %20 = vector.load %arg4[%c0_8, %c0_9] : memref<8x640xf32, #tpu.memory_space<vmem>>, vector<8x640xf32>
    tpu.vector_store %arg4[%c0_8, %c0_9], %19 {strides = array<i32>} : memref<8x640xf32, #tpu.memory_space<vmem>>, vector<8x640xf32>,
    return
  }
  func.func @transform_0(%arg0: i32) -> (i32, i32) {
    %c0_i32 = arith.constant 0 : i32
    %c0_i32_0 = arith.constant 0 : i32
    %c0_i32_1 = arith.constant 0 : i32
    return %c0_i32, %c0_i32_0 : i32, i32
  }
  func.func @transform_1(%arg0: i32) -> (i32, i32) {
    %c0_i32 = arith.constant 0 : i32
    %c0_i32_0 = arith.constant 0 : i32
    %c0_i32_1 = arith.constant 0 : i32
    return %c0_i32, %c0_i32_0 : i32, i32
  }
  func.func @transform_2(%arg0: i32) -> (i32, i32) {
    %c0_i32 = arith.constant 0 : i32
    %c0_i32_0 = arith.constant 0 : i32
    %c0_i32_1 = arith.constant 0 : i32
    return %c0_i32, %c0_i32_0 : i32, i32
  }
  func.func @transform_3(%arg0: i32) -> (i32, i32) {
    %c0_i32 = arith.constant 0 : i32
    %c0_i32_0 = arith.constant 0 : i32
    %c0_i32_1 = arith.constant 0 : i32
    return %c0_i32, %c0_i32_0 : i32, i32
  }
}

</mosaic_0001>

<llo_original>
// kernel: model_forward.1
$region0: #{model_forward.1}
  #allocation0 [shape = 'u32[]', space=smem, size = 0x4, offset = 0x4, fixed_abs, tag = 'smem constant byte address 0x4 - core index']
  #allocation1 [shape = 'u32[72,128]{1,0:T(1,128)}', space=vmem, size = 0x9000, scoped, tag = 'internal scratch']
  %s0 = inlined_call_operand.vmem [shape: f32[72,640], index: 0, kind: input, shape index: {}]
  %s1 = inlined_call_operand.vmem [shape: f32[24,72], index: 1, kind: input, shape index: {}]
  %s2 = inlined_call_operand.vmem [shape: f32[24,1], index: 2, kind: input, shape index: {}]
  %s3 = inlined_call_operand.vmem [shape: f32[8,640], index: 3, kind: output, shape index: {}]
  %s4 = sld [smem:[#allocation0]]
  $region22: #{model_forward.1} parent=0
    _
  %s6 = ssub.s32 1, %s4
  %s7 = scalar_select 0, %s6, %s4
  // Predicated region
  $region2: #{model_forward.1} parent=0 // pred_check
    _
  $region3: #{model_forward.1} parent=0 // pred_check_branch
    %9 = sbr.rel (0) target = $region5
  $region4: #{model_forward.1} parent=0 // pred_region
    _
  $region5: #{model_forward.1} parent=0 // pred_fallthru
    _
  // Predicated region
  $region6: #{model_forward.1} parent=0 // pred_check
    _
  $region7: #{model_forward.1} parent=0 // pred_check_branch
    %11 = sbr.rel (0) target = $region9
  $region8: #{model_forward.1} parent=0 // pred_region
    _
  $region9: #{model_forward.1} parent=0 // pred_fallthru
    _
  // Predicated region
  $region10: #{model_forward.1} parent=0 // pred_check
    _
  $region11: #{model_forward.1} parent=0 // pred_check_branch
    %13 = sbr.rel (0) target = $region13
  $region12: #{model_forward.1} parent=0 // pred_region
    _
  $region13: #{model_forward.1} parent=0 // pred_fallthru
    _
  %v14 = vld [vmem:[%s1] sm:$0xff]
  %v15 = vld [vmem:[%s1 + $0x8] sm:$0xff]
  %v16 = vld [vmem:[%s1 + $0x10] sm:$0xff]
  %v17 = vld [vmem:[%s0] sm:$0xff]
  %v18 = vld [vmem:[%s0 + $0x8] sm:$0xff]
  %v19 = vld [vmem:[%s0 + $0x10] sm:$0xff]
  %v20 = vld [vmem:[%s0 + $0x18] sm:$0xff]
  %v21 = vld [vmem:[%s0 + $0x20] sm:$0xff]
  %v22 = vld [vmem:[%s0 + $0x28] sm:$0xff]
  %v23 = vld [vmem:[%s0 + $0x30] sm:$0xff]
  %v24 = vld [vmem:[%s0 + $0x38] sm:$0xff]
  %v25 = vld [vmem:[%s0 + $0x40] sm:$0xff]
  %v26 = vld [vmem:[%s0 + $0x48] sm:$0xff]
  %v27 = vld [vmem:[%s0 + $0x50] sm:$0xff]
  %v28 = vld [vmem:[%s0 + $0x58] sm:$0xff]
  %v29 = vld [vmem:[%s0 + $0x60] sm:$0xff]
  %v30 = vld [vmem:[%s0 + $0x68] sm:$0xff]
  %v31 = vld [vmem:[%s0 + $0x70] sm:$0xff]
  %v32 = vld [vmem:[%s0 + $0x78] sm:$0xff]
  %v33 = vld [vmem:[%s0 + $0x80] sm:$0xff]
  %v34 = vld [vmem:[%s0 + $0x88] sm:$0xff]
  %v35 = vld [vmem:[%s0 + $0x90] sm:$0xff]
  %v36 = vld [vmem:[%s0 + $0x98] sm:$0xff]
  %v37 = vld [vmem:[%s0 + $0xa0] sm:$0xff]
  %v38 = vld [vmem:[%s0 + $0xa8] sm:$0xff]
  %v39 = vld [vmem:[%s0 + $0xb0] sm:$0xff]
  %v40 = vld [vmem:[%s0 + $0xb8] sm:$0xff]
  %v41 = vld [vmem:[%s0 + $0xc0] sm:$0xff]
  %v42 = vld [vmem:[%s0 + $0xc8] sm:$0xff]
  %v43 = vld [vmem:[%s0 + $0xd0] sm:$0xff]
  %v44 = vld [vmem:[%s0 + $0xd8] sm:$0xff]
  %v45 = vld [vmem:[%s0 + $0xe0] sm:$0xff]
  %v46 = vld [vmem:[%s0 + $0xe8] sm:$0xff]
  %v47 = vld [vmem:[%s0 + $0xf0] sm:$0xff]
  %v48 = vld [vmem:[%s0 + $0xf8] sm:$0xff]
  %v49 = vld [vmem:[%s0 + $0x100] sm:$0xff]
  %v50 = vld [vmem:[%s0 + $0x108] sm:$0xff]
  %v51 = vld [vmem:[%s0 + $0x110] sm:$0xff]
  %v52 = vld [vmem:[%s0 + $0x118] sm:$0xff]
  %v53 = vld [vmem:[%s0 + $0x120] sm:$0xff]
  %v54 = vld [vmem:[%s0 + $0x128] sm:$0xff]
  %v55 = vld [vmem:[%s0 + $0x130] sm:$0xff]
  %v56 = vld [vmem:[%s0 + $0x138] sm:$0xff]
  %v57 = vld [vmem:[%s0 + $0x140] sm:$0xff]
  %v58 = vld [vmem:[%s0 + $0x148] sm:$0xff]
  %v59 = vld [vmem:[%s0 + $0x150] sm:$0xff]
  %v60 = vld [vmem:[%s0 + $0x158] sm:$0xff]
  %v61 = vld [vmem:[%s0 + $0x160] sm:$0xff]
  %v62 = vld [vmem:[%s2] sm:$0xff]
  %v63 = vld [vmem:[%s2 + $0x8] sm:$0xff]
  %v64 = vld [vmem:[%s2 + $0x10] sm:$0xff]
  %66 = vset.pattern.permute.xlu0 0
  %67 = vperm.xlu0 %66, %v62
  %v68 = vpop.permute.xlu0 %67
  %71 = vset.pattern.permute.xlu0 0
  %72 = vperm.xlu0 %71, %v63
  %v73 = vpop.permute.xlu0 %72
  %76 = vset.pattern.permute.xlu0 0
  %77 = vperm.xlu0 %76, %v64
  %v78 = vpop.permute.xlu0 %77
  %vm80 = vcmask 588800
  %v82 = vsel %vm80, %v14, 0
  %v85 = vsel %vm80, %v15, 0
  %v88 = vsel %vm80, %v16, 0
  %90 = vmatpush.msra.mxu0 0.0
  %91 = vmatpush.msra.mxu0 0.0
  %92 = vmatpush.msra.mxu0 0.0
  %93 = vmatpush.msra.mxu0 0.0
  %94 = vmatpush.msra.mxu0 0.0
  %95 = vmatpush.msra.mxu0 0.0
  %96 = vmatpush.msra.mxu0 0.0
  %97 = vmatpush.msra.mxu0 %v57
  %98 = vmatpush.msra.mxu0 %v52
  %99 = vmatpush.msra.mxu0 %v47
  %100 = vmatpush.msra.mxu0 %v42
  %101 = vmatpush.msra.mxu0 %v37
  %102 = vmatpush.msra.mxu0 %v32
  %103 = vmatpush.msra.mxu0 %v27
  %104 = vmatpush.msra.mxu0 %v22
  %105 = vmatpush.msra.mxu0 %v17
  %106 = vmatmul.f32.gmra.mxu0 %v82
  %v107 = vpop.f32.mrf.mxu0
  %v108 = vadd.f32 %v68, %v107
  %109 = vmatmul.f32.gmra.mxu0 %v85
  %v110 = vpop.f32.mrf.mxu0
  %v111 = vadd.f32 %v73, %v110
  %112 = vmatmul.f32.gmra.mxu0 %v88
  %v113 = vpop.f32.mrf.mxu0
  %v114 = vadd.f32 %v78, %v113
  %115 = vdwg.mxu0
  %116 = vmatpush.msra.mxu0 0.0
  %117 = vmatpush.msra.mxu0 0.0
  %118 = vmatpush.msra.mxu0 0.0
  %119 = vmatpush.msra.mxu0 0.0
  %120 = vmatpush.msra.mxu0 0.0
  %121 = vmatpush.msra.mxu0 0.0
  %122 = vmatpush.msra.mxu0 0.0
  %123 = vmatpush.msra.mxu0 %v58
  %124 = vmatpush.msra.mxu0 %v53
  %125 = vmatpush.msra.mxu0 %v48
  %126 = vmatpush.msra.mxu0 %v43
  %127 = vmatpush.msra.mxu0 %v38
  %128 = vmatpush.msra.mxu0 %v33
  %129 = vmatpush.msra.mxu0 %v28
  %130 = vmatpush.msra.mxu0 %v23
  %131 = vmatpush.msra.mxu0 %v18
  %132 = vmatmul.f32.gmra.mxu0 %v82
  %v133 = vpop.f32.mrf.mxu0
  %v134 = vadd.f32 %v68, %v133
  %135 = vmatmul.f32.gmra.mxu0 %v85
  %v136 = vpop.f32.mrf.mxu0
  %v137 = vadd.f32 %v73, %v136
  %138 = vmatmul.f32.gmra.mxu0 %v88
  %v139 = vpop.f32.mrf.mxu0
  %v140 = vadd.f32 %v78, %v139
  %141 = vdwg.mxu0
  %142 = vmatpush.msra.mxu0 0.0
  %143 = vmatpush.msra.mxu0 0.0
  %144 = vmatpush.msra.mxu0 0.0
  %145 = vmatpush.msra.mxu0 0.0
  %146 = vmatpush.msra.mxu0 0.0
  %147 = vmatpush.msra.mxu0 0.0
  %148 = vmatpush.msra.mxu0 0.0
  %149 = vmatpush.msra.mxu0 %v59
  %150 = vmatpush.msra.mxu0 %v54
  %151 = vmatpush.msra.mxu0 %v49
  %152 = vmatpush.msra.mxu0 %v44
  %153 = vmatpush.msra.mxu0 %v39
  %154 = vmatpush.msra.mxu0 %v34
  %155 = vmatpush.msra.mxu0 %v29
  %156 = vmatpush.msra.mxu0 %v24
  %157 = vmatpush.msra.mxu0 %v19
  %158 = vmatmul.f32.gmra.mxu0 %v82
  %v159 = vpop.f32.mrf.mxu0
  %v160 = vadd.f32 %v68, %v159
  %161 = vmatmul.f32.gmra.mxu0 %v85
  %v162 = vpop.f32.mrf.mxu0
  %v163 = vadd.f32 %v73, %v162
  %164 = vmatmul.f32.gmra.mxu0 %v88
  %v165 = vpop.f32.mrf.mxu0
  %v166 = vadd.f32 %v78, %v165
  %167 = vdwg.mxu0
  %168 = vmatpush.msra.mxu0 0.0
  %169 = vmatpush.msra.mxu0 0.0
  %170 = vmatpush.msra.mxu0 0.0
  %171 = vmatpush.msra.mxu0 0.0
  %172 = vmatpush.msra.mxu0 0.0
  %173 = vmatpush.msra.mxu0 0.0
  %174 = vmatpush.msra.mxu0 0.0
  %175 = vmatpush.msra.mxu0 %v60
  %176 = vmatpush.msra.mxu0 %v55
  %177 = vmatpush.msra.mxu0 %v50
  %178 = vmatpush.msra.mxu0 %v45
  %179 = vmatpush.msra.mxu0 %v40
  %180 = vmatpush.msra.mxu0 %v35
  %181 = vmatpush.msra.mxu0 %v30
  %182 = vmatpush.msra.mxu0 %v25
  %183 = vmatpush.msra.mxu0 %v20
  %184 = vmatmul.f32.gmra.mxu0 %v82
  %v185 = vpop.f32.mrf.mxu0
  %v186 = vadd.f32 %v68, %v185
  %187 = vmatmul.f32.gmra.mxu0 %v85
  %v188 = vpop.f32.mrf.mxu0
  %v189 = vadd.f32 %v73, %v188
  %190 = vmatmul.f32.gmra.mxu0 %v88
  %v191 = vpop.f32.mrf.mxu0
  %v192 = vadd.f32 %v78, %v191
  %193 = vdwg.mxu0
  %194 = vmatpush.msra.mxu0 0.0
  %195 = vmatpush.msra.mxu0 0.0
  %196 = vmatpush.msra.mxu0 0.0
  %197 = vmatpush.msra.mxu0 0.0
  %198 = vmatpush.msra.mxu0 0.0
  %199 = vmatpush.msra.mxu0 0.0
  %200 = vmatpush.msra.mxu0 0.0
  %201 = vmatpush.msra.mxu0 %v61
  %202 = vmatpush.msra.mxu0 %v56
  %203 = vmatpush.msra.mxu0 %v51
  %204 = vmatpush.msra.mxu0 %v46
  %205 = vmatpush.msra.mxu0 %v41
  %206 = vmatpush.msra.mxu0 %v36
  %207 = vmatpush.msra.mxu0 %v31
  %208 = vmatpush.msra.mxu0 %v26
  %209 = vmatpush.msra.mxu0 %v21
  %210 = vmatmul.f32.gmra.mxu0 %v82
  %v211 = vpop.f32.mrf.mxu0
  %v212 = vadd.f32 %v68, %v211
  %213 = vmatmul.f32.gmra.mxu0 %v85
  %v214 = vpop.f32.mrf.mxu0
  %v215 = vadd.f32 %v73, %v214
  %216 = vmatmul.f32.gmra.mxu0 %v88
  %v217 = vpop.f32.mrf.mxu0
  %v218 = vadd.f32 %v78, %v217
  %219 = vdwg.mxu0
  %v220 = vmax.f32 %v108, 0.0
  %v221 = vmax.f32 %v134, 0.0
  %v222 = vmax.f32 %v160, 0.0
  %v223 = vmax.f32 %v186, 0.0
  %v224 = vmax.f32 %v212, 0.0
  %v225 = vmax.f32 %v114, 0.0
  %v226 = vmax.f32 %v140, 0.0
  %v227 = vmax.f32 %v166, 0.0
  %v228 = vmax.f32 %v192, 0.0
  %v229 = vmax.f32 %v218, 0.0
  %v230 = vadd.f32 %v220, %v225
  %v231 = vadd.f32 %v221, %v226
  %v232 = vadd.f32 %v222, %v227
  %v233 = vadd.f32 %v223, %v228
  %v234 = vadd.f32 %v224, %v229
  %v235 = vadd.f32 %v230, %v111
  %v236 = vadd.f32 %v231, %v137
  %v237 = vadd.f32 %v232, %v163
  %v238 = vadd.f32 %v233, %v189
  %v239 = vadd.f32 %v234, %v215
  %v240 = vxor.u32 %v235, 2147483648
  %v241 = vxor.u32 %v236, 2147483648
  %v242 = vxor.u32 %v237, 2147483648
  %v243 = vxor.u32 %v238, 2147483648
  %v244 = vxor.u32 %v239, 2147483648
  %v245 = vmul.f32 %v240, 1.442695
  %v246 = vpow.pop %v245
  %v247 = vmul.f32 %v241, 1.442695
  %v248 = vpow.pop %v247
  %v249 = vmul.f32 %v242, 1.442695
  %v250 = vpow.pop %v249
  %v251 = vmul.f32 %v243, 1.442695
  %v252 = vpow.pop %v251
  %v253 = vmul.f32 %v244, 1.442695
  %v254 = vpow.pop %v253
  %v255 = vadd.f32 %v246, 1.0
  %v256 = vadd.f32 %v248, 1.0
  %v257 = vadd.f32 %v250, 1.0
  %v258 = vadd.f32 %v252, 1.0
  %v259 = vadd.f32 %v254, 1.0
  %v260 = vrcp.pop %v255
  %v261 = vmul.f32 %v255, %v260
  %v262 = vsub.f32 1.0, %v261
  %v263 = vmul.f32 %v260, %v262
  %v264 = vadd.f32 %v260, %v263
  %vm265 = vweird.f32 %v255
  %vm266 = vweird.f32 %v260
  %vm267 = vmor %vm265, %vm266
  %v268 = vsel %vm267, %v260, %v264
  %v269 = vand.u32 2147483647, %v255
  %vm270 = vcmp.eq.f32.partialorder %v269, 8.507059e+37
  %v271 = vand.u32 %v255, 2147483648
  %v272 = vor.u32 1.1754944e-38, %v271
  %v273 = vsel %vm270, %v272, %v268
  %v274 = vmul.f32 1.0, %v273
  %v275 = vrcp.pop %v256
  %v276 = vmul.f32 %v256, %v275
  %v277 = vsub.f32 1.0, %v276
  %v278 = vmul.f32 %v275, %v277
  %v279 = vadd.f32 %v275, %v278
  %vm280 = vweird.f32 %v256
  %vm281 = vweird.f32 %v275
  %vm282 = vmor %vm280, %vm281
  %v283 = vsel %vm282, %v275, %v279
  %v284 = vand.u32 2147483647, %v256
  %vm285 = vcmp.eq.f32.partialorder %v284, 8.507059e+37
  %v286 = vand.u32 %v256, 2147483648
  %v287 = vor.u32 1.1754944e-38, %v286
  %v288 = vsel %vm285, %v287, %v283
  %v289 = vmul.f32 1.0, %v288
  %v290 = vrcp.pop %v257
  %v291 = vmul.f32 %v257, %v290
  %v292 = vsub.f32 1.0, %v291
  %v293 = vmul.f32 %v290, %v292
  %v294 = vadd.f32 %v290, %v293
  %vm295 = vweird.f32 %v257
  %vm296 = vweird.f32 %v290
  %vm297 = vmor %vm295, %vm296
  %v298 = vsel %vm297, %v290, %v294
  %v299 = vand.u32 2147483647, %v257
  %vm300 = vcmp.eq.f32.partialorder %v299, 8.507059e+37
  %v301 = vand.u32 %v257, 2147483648
  %v302 = vor.u32 1.1754944e-38, %v301
  %v303 = vsel %vm300, %v302, %v298
  %v304 = vmul.f32 1.0, %v303
  %v305 = vrcp.pop %v258
  %v306 = vmul.f32 %v258, %v305
  %v307 = vsub.f32 1.0, %v306
  %v308 = vmul.f32 %v305, %v307
  %v309 = vadd.f32 %v305, %v308
  %vm310 = vweird.f32 %v258
  %vm311 = vweird.f32 %v305
  %vm312 = vmor %vm310, %vm311
  %v313 = vsel %vm312, %v305, %v309
  %v314 = vand.u32 2147483647, %v258
  %vm315 = vcmp.eq.f32.partialorder %v314, 8.507059e+37
  %v316 = vand.u32 %v258, 2147483648
  %v317 = vor.u32 1.1754944e-38, %v316
  %v318 = vsel %vm315, %v317, %v313
  %v319 = vmul.f32 1.0, %v318
  %v320 = vrcp.pop %v259
  %v321 = vmul.f32 %v259, %v320
  %v322 = vsub.f32 1.0, %v321
  %v323 = vmul.f32 %v320, %v322
  %v324 = vadd.f32 %v320, %v323
  %vm325 = vweird.f32 %v259
  %vm326 = vweird.f32 %v320
  %vm327 = vmor %vm325, %vm326
  %v328 = vsel %vm327, %v320, %v324
  %v329 = vand.u32 2147483647, %v259
  %vm330 = vcmp.eq.f32.partialorder %v329, 8.507059e+37
  %v331 = vand.u32 %v259, 2147483648
  %v332 = vor.u32 1.1754944e-38, %v331
  %v333 = vsel %vm330, %v332, %v328
  %v334 = vmul.f32 1.0, %v333
  %335 = vst [vmem:[%s3] sm:$0xff] %v274
  %336 = vst [vmem:[%s3 + $0x8] sm:$0xff] %v289
  %337 = vst [vmem:[%s3 + $0x10] sm:$0xff] %v304
  %338 = vst [vmem:[%s3 + $0x18] sm:$0xff] %v319
  %339 = vst [vmem:[%s3 + $0x20] sm:$0xff] %v334
  // Predicated region
  $region14: #{model_forward.1} parent=0 // pred_check
    _
  $region15: #{model_forward.1} parent=0 // pred_check_branch
    %341 = sbr.rel (0) target = $region17
  $region16: #{model_forward.1} parent=0 // pred_region
    _
  $region17: #{model_forward.1} parent=0 // pred_fallthru
    _
  // Predicated region
  $region18: #{model_forward.1} parent=0 // pred_check
    _
  $region19: #{model_forward.1} parent=0 // pred_check_branch
    %343 = sbr.rel (0) target = $region21
  $region20: #{model_forward.1} parent=0 // pred_region
    _
  $region21: #{model_forward.1} parent=0 // pred_fallthru
    _

</llo_original>
